<compile_context>
chip_gen: v5e
topology: v5e:2x2
jax: 0.10.0
libtpu: 0.0.40
codegen_flags: <defaults>
</compile_context>

<pallas_src>
import functools

import jax
import jax.numpy as jnp
from jax.experimental import pallas as pl
from jax.experimental.pallas import tpu as pltpu

IN_FEATURES = 3
OUT_FEATURES = 16

# Folded constants:  0.7978845608028654 * (0.5*v1 + 0.044715*v1**3)
#                 == _C1*v1 + _C2*v1**3
_C1 = 0.5 * 0.7978845608028654
_C2 = 0.044715 * 0.7978845608028654


def _gelu_linear_kernel(x_ref, w_ref, b_ref, o_ref):
    """x_ref: (3, TB) batch-on-lanes; w_ref: (16, 3); b_ref: (16, 1); o_ref: (TB, 16)."""
    x = x_ref[...]          # (3, TB)  f32
    w = w_ref[...]          # (16, 3)  f32 (PyTorch layout, resident across tiles)
    b = b_ref[...]          # (16, 1)  f32

    # v1 = W @ x^T + b as three VPU broadcast-FMAs (no MXU for a 3x16 contraction).
    v1 = (w[:, 0:1] * x[0:1, :]
          + w[:, 1:2] * x[1:2, :]
          + w[:, 2:3] * x[2:3, :]
          + b)                                   # (16, TB)

    # TODO(synk): PyTorch source is shape-invalid (`self.linear(v1)` on a
    # 16-wide tensor, `torch.pow(v3)` with no exponent); implemented as the
    # intended tanh-GELU-style pattern (v3 = v1, pow -> cube), matching the
    # previous kernel's reference semantics.
    t = v1 * (_C1 + _C2 * (v1 * v1))             # folded polynomial (VPU)
    y = v1 + v1 * jnp.tanh(t)                    # == v1*(1+tanh(t)); tanh on EUP

    # Transpose on the XLU (overlaps VPU/EUP) so the HBM output is written
    # directly in (B, 16) row-major layout -- no wrapper transpose pass.
    o_ref[...] = y.T                             # (TB, 16)


def _round_up(x, m):
    return (x + m - 1) // m * m


@functools.partial(jax.jit, static_argnames=("tile_b",))
def gelu_linear(x, weight, bias, *, tile_b=8192):
    """x: (B, 3) f32, weight: (16, 3) f32 (PyTorch layout), bias: (16,) f32 -> (B, 16)."""
    batch = x.shape[0]
    tile_b = max(128, _round_up(int(tile_b), 128))
    # Keep >= ~4 tiles when the batch allows it (megacore / v7x 2-TC balance),
    # but never below 128 lanes (layout constraint) and never above tile_b.
    eff_tile = min(tile_b, max(128, _round_up(pl.cdiv(batch, 4), 128)))
    n_tiles = pl.cdiv(batch, eff_tile)

    # Batch on the lane axis for compute: x^T is (3, B).  No zero-padded slab
    # is materialized; the last grid block simply overhangs.
    x_t = x.astype(jnp.float32).T
    w = weight.astype(jnp.float32)
    b_col = bias.reshape(OUT_FEATURES, 1).astype(jnp.float32)

    # ~ 2 lane-padded out buffers + transpose temp + 2 in buffers + live f32
    # intermediates, plus headroom.  ~24 MiB at the default 8192-lane tile.
    vmem_limit = int(max(8 * 1024 * 1024, 2560 * eff_tile + 4 * 1024 * 1024))

    # TODO(synk): output could be emitted as bfloat16 (halves ~84% of HBM bytes)
    # if a downstream consumer tolerates it; kept f32 to match module semantics.
    out = pl.pallas_call(
        _gelu_linear_kernel,
        out_shape=jax.ShapeDtypeStruct((batch, OUT_FEATURES), jnp.float32),
        grid=(n_tiles,),
        in_specs=[
            pl.BlockSpec((IN_FEATURES, eff_tile), lambda i: (0, i)),
            pl.BlockSpec((OUT_FEATURES, IN_FEATURES), lambda i: (0, 0)),
            pl.BlockSpec((OUT_FEATURES, 1), lambda i: (0, 0)),
        ],
        out_specs=pl.BlockSpec((eff_tile, OUT_FEATURES), lambda i: (i, 0)),
        compiler_params=pltpu.CompilerParams(
            dimension_semantics=("parallel",),
            vmem_limit_bytes=vmem_limit,
        ),
    )(x_t, w, b_col)

    return out


if __name__ == "__main__":
    key = jax.random.PRNGKey(0)
    kx, kw, kb = jax.random.split(key, 3)

    # Deterministic parameter init (shapes from nn.Linear(3, 16)).
    bound = 1.0 / (IN_FEATURES ** 0.5)
    weight = jax.random.uniform(kw, (OUT_FEATURES, IN_FEATURES),
                                minval=-bound, maxval=bound, dtype=jnp.float32)
    bias = jax.random.uniform(kb, (OUT_FEATURES,),
                              minval=-bound, maxval=bound, dtype=jnp.float32)

    # Input consistent with the module: x1 ~ randn(1, 3); batch=2 for a small demo.
    x1 = jax.random.normal(kx, (2, IN_FEATURES), dtype=jnp.float32)

    out = gelu_linear(x1, weight, bias)
    jax.block_until_ready(out)

    # Pure-JAX reference check (unfolded constants).
    v1 = x1 @ weight.T + bias
    ref = v1 * (jnp.tanh((v1 * 0.5 + 0.044715 * v1 ** 3) * 0.7978845608028654) + 1.0)
    assert out.shape == (2, OUT_FEATURES)
    assert jnp.allclose(out, ref, atol=1e-5, rtol=1e-5)

    print("KERNEL_OK")
</pallas_src>

<mosaic_0001>
module attributes {stable_mosaic.version = 11 : i64} {
  func.func @_gelu_linear_kernel(%arg0: i32, %arg1: memref<3x128xf32, #tpu.memory_space<vmem>>, %arg2: memref<16x3xf32, #tpu.memory_space<vmem>>, %arg3: memref<16x1xf32, #tpu.memory_space<vmem>>, %arg4: memref<128x16xf32, #tpu.memory_space<vmem>>) attributes {dimension_semantics = [#tpu.dimension_semantics<parallel>], iteration_bounds = array<i64: 1>, scalar_prefetch = 0 : i64, scratch_operands = 0 : i64, tpu.core_type = #tpu.core_type<tc>, window_params = [{transform_indices = @transform_0, window_bounds = array<i64: 3, 128>}, {pipeline_mode = #tpu.pipeline_mode<synchronous>, transform_indices = @transform_1, window_bounds = array<i64: 16, 3>}, {pipeline_mode = #tpu.pipeline_mode<synchronous>, transform_indices = @transform_2, window_bounds = array<i64: 16, 1>}, {transform_indices = @transform_3, window_bounds = array<i64: 128, 16>}]} {
    %c0 = arith.constant 0 : index
    %c0_0 = arith.constant 0 : index
    %0 = vector.load %arg1[%c0, %c0_0] : memref<3x128xf32, #tpu.memory_space<vmem>>, vector<3x128xf32>
    %c0_1 = arith.constant 0 : index
    %c0_2 = arith.constant 0 : index
    %1 = vector.load %arg2[%c0_1, %c0_2] : memref<16x3xf32, #tpu.memory_space<vmem>>, vector<16x3xf32>
    %c0_3 = arith.constant 0 : index
    %c0_4 = arith.constant 0 : index
    %2 = vector.load %arg3[%c0_3, %c0_4] : memref<16x1xf32, #tpu.memory_space<vmem>>, vector<16x1xf32>
    %3 = vector.extract_strided_slice %1 {offsets = [0, 0], sizes = [16, 1], strides = [1, 1]} : vector<16x3xf32> to vector<16x1xf32>
    %4 = vector.extract_strided_slice %0 {offsets = [0, 0], sizes = [1, 128], strides = [1, 1]} : vector<3x128xf32> to vector<1x128xf32>
    %5 = vector.broadcast %3 : vector<16x1xf32> to vector<16x128xf32>
    %6 = vector.broadcast %4 : vector<1x128xf32> to vector<16x128xf32>
    %7 = arith.mulf %5, %6 : vector<16x128xf32>
    %8 = vector.extract_strided_slice %1 {offsets = [0, 1], sizes = [16, 1], strides = [1, 1]} : vector<16x3xf32> to vector<16x1xf32>
    %9 = vector.extract_strided_slice %0 {offsets = [1, 0], sizes = [1, 128], strides = [1, 1]} : vector<3x128xf32> to vector<1x128xf32>
    %10 = vector.broadcast %8 : vector<16x1xf32> to vector<16x128xf32>
    %11 = vector.broadcast %9 : vector<1x128xf32> to vector<16x128xf32>
    %12 = arith.mulf %10, %11 : vector<16x128xf32>
    %13 = arith.addf %7, %12 : vector<16x128xf32>
    %14 = vector.extract_strided_slice %1 {offsets = [0, 2], sizes = [16, 1], strides = [1, 1]} : vector<16x3xf32> to vector<16x1xf32>
    %15 = vector.extract_strided_slice %0 {offsets = [2, 0], sizes = [1, 128], strides = [1, 1]} : vector<3x128xf32> to vector<1x128xf32>
    %16 = vector.broadcast %14 : vector<16x1xf32> to vector<16x128xf32>
    %17 = vector.broadcast %15 : vector<1x128xf32> to vector<16x128xf32>
    %18 = arith.mulf %16, %17 : vector<16x128xf32>
    %19 = arith.addf %13, %18 : vector<16x128xf32>
    %20 = vector.broadcast %2 : vector<16x1xf32> to vector<16x128xf32>
    %21 = arith.addf %19, %20 : vector<16x128xf32>
    %22 = arith.mulf %21, %21 : vector<16x128xf32>
    %cst = arith.constant 0.0356774069 : f32
    %23 = vector.broadcast %cst : f32 to vector<16x128xf32>
    %24 = arith.mulf %23, %22 : vector<16x128xf32>
    %cst_5 = arith.constant 0.398942292 : f32
    %25 = vector.broadcast %cst_5 : f32 to vector<16x128xf32>
    %26 = arith.addf %25, %24 : vector<16x128xf32>
    %27 = arith.mulf %21, %26 : vector<16x128xf32>
    %28 = math.tanh %27 : vector<16x128xf32>
    %29 = arith.mulf %21, %28 : vector<16x128xf32>
    %30 = arith.addf %21, %29 : vector<16x128xf32>
    %31 = tpu.transpose %30, [1, 0] : vector<16x128xf32> -> vector<128x16xf32>
    %c0_6 = arith.constant 0 : index
    %c0_7 = arith.constant 0 : index
    %32 = vector.load %arg4[%c0_6, %c0_7] : memref<128x16xf32, #tpu.memory_space<vmem>>, vector<128x16xf32>
    tpu.vector_store %arg4[%c0_6, %c0_7], %31 {strides = array<i32>} : memref<128x16xf32, #tpu.memory_space<vmem>>, vector<128x16xf32>,
    return
  }
  func.func @transform_0(%arg0: i32) -> (i32, i32) {
    %c0_i32 = arith.constant 0 : i32
    %c0_i32_0 = arith.constant 0 : i32
    return %c0_i32, %arg0 : i32, i32
  }
  func.func @transform_1(%arg0: i32) -> (i32, i32) {
    %c0_i32 = arith.constant 0 : i32
    %c0_i32_0 = arith.constant 0 : i32
    %c0_i32_1 = arith.constant 0 : i32
    return %c0_i32, %c0_i32_0 : i32, i32
  }
  func.func @transform_2(%arg0: i32) -> (i32, i32) {
    %c0_i32 = arith.constant 0 : i32
    %c0_i32_0 = arith.constant 0 : i32
    %c0_i32_1 = arith.constant 0 : i32
    return %c0_i32, %c0_i32_0 : i32, i32
  }
  func.func @transform_3(%arg0: i32) -> (i32, i32) {
    %c0_i32 = arith.constant 0 : i32
    %c0_i32_0 = arith.constant 0 : i32
    return %arg0, %c0_i32 : i32, i32
  }
}

</mosaic_0001>

<llo_original>
// kernel: gelu_linear.1
$region0: #{gelu_linear.1}
  #allocation0 [shape = 'u32[]', space=smem, size = 0x4, offset = 0x4, fixed_abs, tag = 'smem constant byte address 0x4 - core index']
  #allocation1 [shape = 'u32[72,128]{1,0:T(1,128)}', space=vmem, size = 0x9000, scoped, tag = 'internal scratch']
  %s0 = inlined_call_operand.vmem [shape: f32[3,2], index: 0, kind: input, shape index: {}]
  %s1 = inlined_call_operand.vmem [shape: f32[16,3], index: 1, kind: input, shape index: {}]
  %s2 = inlined_call_operand.vmem [shape: f32[16,1], index: 2, kind: input, shape index: {}]
  %s3 = inlined_call_operand.hbm [shape: f32[2,16], index: 3, kind: output, shape index: {}]
  %s4 = sld [smem:[#allocation0]]
  $region22: #{gelu_linear.1} parent=0
    _
  %s6 = ssub.s32 1, %s4
  %s7 = scalar_select 0, %s6, %s4
  $region1: #{gelu_linear.1} parent=0
    #allocation2 [shape = 'u8[65536]{0}', space=vmem, size = 0x10000, scoped, tag = 'output window, operand 0, single buffered']
    #allocation3 [shape = 's32[1]{0}', space=sflag, size = 0x4, scoped, tag = 'scoped memory for gelu_linear.1']
    %8 = vsyncpa [#allocation3], 0
    // Predicated region
    $region2: #{gelu_linear.1} parent=1 // pred_check
      _
    $region3: #{gelu_linear.1} parent=1 // pred_check_branch
      %10 = sbr.rel (0) target = $region5
    $region4: #{gelu_linear.1} parent=1 // pred_region
      _
    $region5: #{gelu_linear.1} parent=1 // pred_fallthru
      _
    // Predicated region
    $region6: #{gelu_linear.1} parent=1 // pred_check
      _
    $region7: #{gelu_linear.1} parent=1 // pred_check_branch
      %12 = sbr.rel (0) target = $region9
    $region8: #{gelu_linear.1} parent=1 // pred_region
      _
    $region9: #{gelu_linear.1} parent=1 // pred_fallthru
      _
    // Predicated region
    $region10: #{gelu_linear.1} parent=1 // pred_check
      _
    $region11: #{gelu_linear.1} parent=1 // pred_check_branch
      %14 = sbr.rel (0) target = $region13
    $region12: #{gelu_linear.1} parent=1 // pred_region
      _
    $region13: #{gelu_linear.1} parent=1 // pred_fallthru
      _
    %v15 = vld [vmem:[%s0] sm:$0x7]
    %v16 = vld [vmem:[%s1] sm:$0xff]
    %v17 = vld [vmem:[%s1 + $0x8] sm:$0xff]
    %v18 = vld [vmem:[%s2] sm:$0xff]
    %v19 = vld [vmem:[%s2 + $0x8] sm:$0xff]
    %21 = vset.pattern.permute.xlu0 0
    %22 = vperm.xlu0 %21, %v16
    %v23 = vpop.permute.xlu0 %22
    %26 = vset.pattern.permute.xlu0 0
    %27 = vperm.xlu0 %26, %v17
    %v28 = vpop.permute.xlu0 %27
    %v30 = vperm.slane %v15, 0
    %v31 = vmul.f32 %v23, %v30
    %v32 = vmul.f32 %v28, %v30
    %33 = vset.pattern.permute.xlu0 1
    %34 = vperm.xlu0 %33, %v16
    %v35 = vpop.permute.xlu0 %34
    %37 = vset.pattern.permute.xlu0 1
    %38 = vperm.xlu0 %37, %v17
    %v39 = vpop.permute.xlu0 %38
    %v41 = vperm.slane %v15, 1
    %v42 = vmul.f32 %v35, %v41
    %v43 = vmul.f32 %v39, %v41
    %v44 = vadd.f32 %v31, %v42
    %v45 = vadd.f32 %v32, %v43
    %46 = vset.pattern.permute.xlu0 2
    %47 = vperm.xlu0 %46, %v16
    %v48 = vpop.permute.xlu0 %47
    %50 = vset.pattern.permute.xlu0 2
    %51 = vperm.xlu0 %50, %v17
    %v52 = vpop.permute.xlu0 %51
    %v54 = vperm.slane %v15, 2
    %v55 = vmul.f32 %v48, %v54
    %v56 = vmul.f32 %v52, %v54
    %v57 = vadd.f32 %v44, %v55
    %v58 = vadd.f32 %v45, %v56
    %60 = vset.pattern.permute.xlu0 0
    %61 = vperm.xlu0 %60, %v18
    %v62 = vpop.permute.xlu0 %61
    %65 = vset.pattern.permute.xlu0 0
    %66 = vperm.xlu0 %65, %v19
    %v67 = vpop.permute.xlu0 %66
    %v69 = vadd.f32 %v57, %v62
    %v70 = vadd.f32 %v58, %v67
    %v71 = vmul.f32 %v69, %v69
    %v72 = vmul.f32 %v70, %v70
    %v73 = vmul.f32 %v71, 0.035677407
    %v74 = vmul.f32 %v72, 0.035677407
    %v75 = vadd.f32 %v73, 0.3989423
    %v76 = vadd.f32 %v74, 0.3989423
    %v77 = vmul.f32 %v69, %v75
    %v78 = vmul.f32 %v70, %v76
    %v79 = vtanh.pop %v77
    %v80 = vtanh.pop %v78
    %v81 = vmul.f32 %v69, %v79
    %v82 = vmul.f32 %v70, %v80
    %v83 = vadd.f32 %v69, %v81
    %v84 = vadd.f32 %v70, %v82
    %85 = vxpose.xlu0.b32.start [1/16] %v83, 128
    %86 = vxpose.xlu0.b32.cont [2/16] %v84, 128
    %87 = vxpose.xlu0.b32.cont [3/16] 0.0, 128
    %88 = vxpose.xlu0.b32.cont [4/16] 0.0, 128
    %89 = vxpose.xlu0.b32.cont [5/16] 0.0, 128
    %90 = vxpose.xlu0.b32.cont [6/16] 0.0, 128
    %91 = vxpose.xlu0.b32.cont [7/16] 0.0, 128
    %92 = vxpose.xlu0.b32.cont [8/16] 0.0, 128
    %93 = vxpose.xlu0.b32.cont [9/16] 0.0, 128
    %94 = vxpose.xlu0.b32.cont [10/16] 0.0, 128
    %95 = vxpose.xlu0.b32.cont [11/16] 0.0, 128
    %96 = vxpose.xlu0.b32.cont [12/16] 0.0, 128
    %97 = vxpose.xlu0.b32.cont [13/16] 0.0, 128
    %98 = vxpose.xlu0.b32.cont [14/16] 0.0, 128
    %99 = vxpose.xlu0.b32.cont [15/16] 0.0, 128
    %100 = vxpose.xlu0.b32.end [16/16] 0.0, 128
    %v101 = vpop.trf.xlu0
    %v102 = vpop.trf.xlu0
    %v103 = vpop.trf.xlu0
    %v104 = vpop.trf.xlu0
    %v105 = vpop.trf.xlu0
    %v106 = vpop.trf.xlu0
    %v107 = vpop.trf.xlu0
    %v108 = vpop.trf.xlu0
    %v109 = vpop.trf.xlu0
    %v110 = vpop.trf.xlu0
    %v111 = vpop.trf.xlu0
    %v112 = vpop.trf.xlu0
    %v113 = vpop.trf.xlu0
    %v114 = vpop.trf.xlu0
    %v115 = vpop.trf.xlu0
    %v116 = vpop.trf.xlu0
    %vm117 = vcmask 130048
    %118 = vst.msk [vmem:[#allocation2] sm:$0xff] %vm117, %v101
    %119 = vst.msk [vmem:[#allocation2 + $0x8] sm:$0xff] %vm117, %v102
    %120 = vst.msk [vmem:[#allocation2 + $0x10] sm:$0xff] %vm117, %v103
    %121 = vst.msk [vmem:[#allocation2 + $0x18] sm:$0xff] %vm117, %v104
    %122 = vst.msk [vmem:[#allocation2 + $0x20] sm:$0xff] %vm117, %v105
    %123 = vst.msk [vmem:[#allocation2 + $0x28] sm:$0xff] %vm117, %v106
    %124 = vst.msk [vmem:[#allocation2 + $0x30] sm:$0xff] %vm117, %v107
    %125 = vst.msk [vmem:[#allocation2 + $0x38] sm:$0xff] %vm117, %v108
    %126 = vst.msk [vmem:[#allocation2 + $0x40] sm:$0xff] %vm117, %v109
    %127 = vst.msk [vmem:[#allocation2 + $0x48] sm:$0xff] %vm117, %v110
    %128 = vst.msk [vmem:[#allocation2 + $0x50] sm:$0xff] %vm117, %v111
    %129 = vst.msk [vmem:[#allocation2 + $0x58] sm:$0xff] %vm117, %v112
    %130 = vst.msk [vmem:[#allocation2 + $0x60] sm:$0xff] %vm117, %v113
    %131 = vst.msk [vmem:[#allocation2 + $0x68] sm:$0xff] %vm117, %v114
    %132 = vst.msk [vmem:[#allocation2 + $0x70] sm:$0xff] %vm117, %v115
    %133 = vst.msk [vmem:[#allocation2 + $0x78] sm:$0xff] %vm117, %v116
    // Predicated region
    $region14: #{gelu_linear.1} parent=1 // pred_check
      _
    $region15: #{gelu_linear.1} parent=1 // pred_check_branch
      %135 = sbr.rel (0) target = $region17
    $region16: #{gelu_linear.1} parent=1 // pred_region
      %137 = vsyncadd [#allocation3], 2016
      %s138 = sshll.u32 [#allocation2], 4
      %s139 = int_to_ptr.vmem [resolvable:$true] %s138
      %s140 = sshll.u32 %s3, 4
      %s141 = int_to_ptr.hbm [resolvable:$true] %s140
      %146 = dma.vmem_to_hbm [thread:$0]  %s139, 32, %s141, [#allocation3], 32, 32, 2
    $region17: #{gelu_linear.1} parent=1 // pred_fallthru
      _
    // Predicated region
    $region18: #{gelu_linear.1} parent=1 // pred_check
      _
    $region19: #{gelu_linear.1} parent=1 // pred_check_branch
      %148 = sbr.rel (0) target = $region21
    $region20: #{gelu_linear.1} parent=1 // pred_region
      %150 = dma.done [#allocation3], 2048
    $region21: #{gelu_linear.1} parent=1 // pred_fallthru
      _
    %151 = vsyncpa [#allocation3], 1

</llo_original>
